<compile_context>
chip_gen: v7x
topology: tpu7x:2x2x1
jax: 0.10.0
libtpu: 0.0.40
codegen_flags: <defaults>
</compile_context>

<pallas_src>
import jax
import jax.numpy as jnp
from jax.experimental import pallas as pl
from jax.experimental.pallas import tpu as pltpu


def _round_up(n, m):
    return ((n + m - 1) // m) * m


def _mlp_kernel(x_ref, w1_ref, b1_ref, w2_ref, b2_ref, o_ref):
    # Fused: matmul -> bias -> ReLU -> matmul -> bias.
    # Weights may be bf16 (use_bf16=True); accumulation is always f32 on MXU.
    w1 = w1_ref[...]                                        # [D, H]
    w2 = w2_ref[...]                                        # [H, C]
    x = x_ref[...].astype(w1.dtype)                         # [TB, D]
    h = jnp.dot(x, w1, preferred_element_type=jnp.float32)  # [TB, H] f32
    h = jnp.maximum(h + b1_ref[...], 0.0)                   # bias + ReLU (f32)
    y = jnp.dot(h.astype(w2.dtype), w2,
                preferred_element_type=jnp.float32)         # [TB, C] f32
    o_ref[...] = (y + b2_ref[...]).astype(o_ref.dtype)


def simple_mlp(x, w1, b1, w2, b2, *, batch_tile=512, use_bf16=False):
    """x: [B, D]; w1: [D, H]; b1: [H]; w2: [H, C]; b2: [C] -> [B, C]."""
    B, D = x.shape
    H = w1.shape[1]
    C = w2.shape[1]
    out_dtype = x.dtype

    # ---- Batch tiling: balanced tiles, multiple of 8 sublanes. -------------
    batch_tile = max(8, _round_up(batch_tile, 8))
    n_tiles = max(1, pl.cdiv(B, batch_tile))
    if B >= 512:
        # Guarantee >= 2 grid steps so both v7x TensorCores get work.
        n_tiles = max(n_tiles, 2)
    TB = _round_up(pl.cdiv(B, n_tiles), 8)
    Bp = _round_up(B, TB)
    grid = Bp // TB

    # Only the batch dim is ever padded (and only if needed); feature dims use
    # full-extent blocks, so no wrapper pad/slice HBM copies for D/H/C.
    xp = x if Bp == B else jnp.zeros((Bp, D), x.dtype).at[:B].set(x)

    # Weight / bias prep (one-time / jit-constant-foldable; no feature padding).
    w_dtype = jnp.bfloat16 if use_bf16 else w1.dtype
    w1k = w1.astype(w_dtype)
    w2k = w2.astype(w_dtype)
    b1k = b1.reshape(1, H).astype(jnp.float32)   # biases stay f32
    b2k = b2.reshape(1, C).astype(jnp.float32)

    itemsize_x = jnp.dtype(x.dtype).itemsize
    itemsize_w = jnp.dtype(w_dtype).itemsize
    itemsize_o = jnp.dtype(out_dtype).itemsize

    # VMEM budget: double-buffered x/out blocks + double-buffered resident
    # weights/biases + live hidden activation + margin.
    vmem_bytes = (
        2 * TB * D * itemsize_x
        + 2 * TB * C * itemsize_o
        + 2 * (D * H + H * C) * itemsize_w
        + 2 * (H + C) * 4
        + TB * H * 4
        + (4 << 20)
    )
    vmem_limit = int(min(max(vmem_bytes, 32 << 20), 100 << 20))

    cost = pl.CostEstimate(
        flops=2 * Bp * (D * H + H * C),
        transcendentals=0,
        bytes_accessed=(Bp * D * itemsize_x
                        + (D * H + H * C) * itemsize_w
                        + (H + C) * 4
                        + Bp * C * itemsize_o),
    )

    out = pl.pallas_call(
        _mlp_kernel,
        out_shape=jax.ShapeDtypeStruct((Bp, C), out_dtype),
        grid=(grid,),
        in_specs=[
            pl.BlockSpec((TB, D), lambda i: (i, 0)),   # x: tiled over batch
            pl.BlockSpec((D, H), lambda i: (0, 0)),    # w1: VMEM-resident
            pl.BlockSpec((1, H), lambda i: (0, 0)),    # b1: VMEM-resident
            pl.BlockSpec((H, C), lambda i: (0, 0)),    # w2: VMEM-resident
            pl.BlockSpec((1, C), lambda i: (0, 0)),    # b2: VMEM-resident
        ],
        out_specs=pl.BlockSpec((TB, C), lambda i: (i, 0)),
        compiler_params=pltpu.CompilerParams(
            dimension_semantics=("parallel",),
            vmem_limit_bytes=vmem_limit,
        ),
        cost_estimate=cost,
    )(xp, w1k, b1k, w2k, b2k)

    return out if Bp == B else out[:B]


if __name__ == "__main__":
    # Shapes implied by the module: x is [batch, input_dim].
    batch, input_dim, hidden_dim, num_classes = 8, 32, 64, 16

    key = jax.random.PRNGKey(0)
    kx, kw1, kb1, kw2, kb2 = jax.random.split(key, 5)

    x = jax.random.normal(kx, (batch, input_dim), dtype=jnp.float32)
    # Deterministic parameter init (PyTorch-Linear shapes, stored transposed).
    w1 = jax.random.normal(kw1, (input_dim, hidden_dim), jnp.float32) * 0.1
    b1 = jax.random.normal(kb1, (hidden_dim,), jnp.float32) * 0.1
    w2 = jax.random.normal(kw2, (hidden_dim, num_classes), jnp.float32) * 0.1
    b2 = jax.random.normal(kb2, (num_classes,), jnp.float32) * 0.1

    ref = jnp.maximum(x @ w1 + b1, 0.0) @ w2 + b2

    # f32 path (matches reference numerics).
    out = jax.block_until_ready(simple_mlp(x, w1, b1, w2, b2))
    assert out.shape == (batch, num_classes)
    assert jnp.allclose(out, ref, atol=1e-5, rtol=1e-5)

    # bf16-weight path (MXU-friendly), looser tolerance.
    out_bf16 = jax.block_until_ready(simple_mlp(x, w1, b1, w2, b2, use_bf16=True))
    assert jnp.allclose(out_bf16, ref, atol=5e-2, rtol=5e-2)

    # Multi-tile grid + batch padding path (B=20, tile=8 -> 3 grid steps).
    x2 = jax.random.normal(kx, (20, input_dim), dtype=jnp.float32)
    ref2 = jnp.maximum(x2 @ w1 + b1, 0.0) @ w2 + b2
    out2 = jax.block_until_ready(simple_mlp(x2, w1, b1, w2, b2, batch_tile=8))
    assert out2.shape == (20, num_classes)
    assert jnp.allclose(out2, ref2, atol=1e-5, rtol=1e-5)

    print("KERNEL_OK")
</pallas_src>

<mosaic_0001>
module attributes {stable_mosaic.version = 11 : i64} {
  func.func @_mlp_kernel(%arg0: i32, %arg1: memref<8x32xf32, #tpu.memory_space<vmem>>, %arg2: memref<32x64xf32, #tpu.memory_space<vmem>>, %arg3: memref<1x64xf32, #tpu.memory_space<vmem>>, %arg4: memref<64x16xf32, #tpu.memory_space<vmem>>, %arg5: memref<1x16xf32, #tpu.memory_space<vmem>>, %arg6: memref<8x16xf32, #tpu.memory_space<vmem>>) attributes {dimension_semantics = [#tpu.dimension_semantics<parallel>], iteration_bounds = array<i64: 1>, scalar_prefetch = 0 : i64, scratch_operands = 0 : i64, tpu.core_type = #tpu.core_type<tc>, window_params = [{transform_indices = @transform_0, window_bounds = array<i64: 8, 32>}, {pipeline_mode = #tpu.pipeline_mode<synchronous>, transform_indices = @transform_1, window_bounds = array<i64: 32, 64>}, {pipeline_mode = #tpu.pipeline_mode<synchronous>, transform_indices = @transform_2, window_bounds = array<i64: 1, 64>}, {pipeline_mode = #tpu.pipeline_mode<synchronous>, transform_indices = @transform_3, window_bounds = array<i64: 64, 16>}, {pipeline_mode = #tpu.pipeline_mode<synchronous>, transform_indices = @transform_4, window_bounds = array<i64: 1, 16>}, {transform_indices = @transform_5, window_bounds = array<i64: 8, 16>}]} {
    %c0 = arith.constant 0 : index
    %c0_0 = arith.constant 0 : index
    %0 = vector.load %arg2[%c0, %c0_0] : memref<32x64xf32, #tpu.memory_space<vmem>>, vector<32x64xf32>
    %c0_1 = arith.constant 0 : index
    %c0_2 = arith.constant 0 : index
    %1 = vector.load %arg4[%c0_1, %c0_2] : memref<64x16xf32, #tpu.memory_space<vmem>>, vector<64x16xf32>
    %c0_3 = arith.constant 0 : index
    %c0_4 = arith.constant 0 : index
    %2 = vector.load %arg1[%c0_3, %c0_4] : memref<8x32xf32, #tpu.memory_space<vmem>>, vector<8x32xf32>
    %cst = arith.constant dense<0.000000e+00> : vector<8x64xf32>
    %3 = tpu.matmul %2, %0, %cst {dimension_numbers = #tpu.dot_dimension_numbers<[1], [0], [0], [1], [0, 0, 1, 1], [], []>} : vector<8x32xf32>, vector<32x64xf32>, vector<8x64xf32> -> vector<8x64xf32>
    %c0_5 = arith.constant 0 : index
    %c0_6 = arith.constant 0 : index
    %4 = vector.load %arg3[%c0_5, %c0_6] : memref<1x64xf32, #tpu.memory_space<vmem>>, vector<1x64xf32>
    %5 = vector.broadcast %4 : vector<1x64xf32> to vector<8x64xf32>
    %6 = arith.addf %3, %5 : vector<8x64xf32>
    %cst_7 = arith.constant 0.000000e+00 : f32
    %7 = vector.broadcast %cst_7 : f32 to vector<8x64xf32>
    %8 = arith.maximumf %6, %7 : vector<8x64xf32>
    %cst_8 = arith.constant dense<0.000000e+00> : vector<8x16xf32>
    %9 = tpu.matmul %8, %1, %cst_8 {dimension_numbers = #tpu.dot_dimension_numbers<[1], [0], [0], [1], [0, 0, 1, 1], [], []>} : vector<8x64xf32>, vector<64x16xf32>, vector<8x16xf32> -> vector<8x16xf32>
    %c0_9 = arith.constant 0 : index
    %c0_10 = arith.constant 0 : index
    %10 = vector.load %arg5[%c0_9, %c0_10] : memref<1x16xf32, #tpu.memory_space<vmem>>, vector<1x16xf32>
    %11 = vector.broadcast %10 : vector<1x16xf32> to vector<8x16xf32>
    %12 = arith.addf %9, %11 : vector<8x16xf32>
    %c0_11 = arith.constant 0 : index
    %c0_12 = arith.constant 0 : index
    %13 = vector.load %arg6[%c0_11, %c0_12] : memref<8x16xf32, #tpu.memory_space<vmem>>, vector<8x16xf32>
    tpu.vector_store %arg6[%c0_11, %c0_12], %12 {strides = array<i32>} : memref<8x16xf32, #tpu.memory_space<vmem>>, vector<8x16xf32>,
    return
  }
  func.func @transform_0(%arg0: i32) -> (i32, i32) {
    %c0_i32 = arith.constant 0 : i32
    %c0_i32_0 = arith.constant 0 : i32
    return %arg0, %c0_i32 : i32, i32
  }
  func.func @transform_1(%arg0: i32) -> (i32, i32) {
    %c0_i32 = arith.constant 0 : i32
    %c0_i32_0 = arith.constant 0 : i32
    %c0_i32_1 = arith.constant 0 : i32
    return %c0_i32, %c0_i32_0 : i32, i32
  }
  func.func @transform_2(%arg0: i32) -> (i32, i32) {
    %c0_i32 = arith.constant 0 : i32
    %c0_i32_0 = arith.constant 0 : i32
    %c0_i32_1 = arith.constant 0 : i32
    return %c0_i32, %c0_i32_0 : i32, i32
  }
  func.func @transform_3(%arg0: i32) -> (i32, i32) {
    %c0_i32 = arith.constant 0 : i32
    %c0_i32_0 = arith.constant 0 : i32
    %c0_i32_1 = arith.constant 0 : i32
    return %c0_i32, %c0_i32_0 : i32, i32
  }
  func.func @transform_4(%arg0: i32) -> (i32, i32) {
    %c0_i32 = arith.constant 0 : i32
    %c0_i32_0 = arith.constant 0 : i32
    %c0_i32_1 = arith.constant 0 : i32
    return %c0_i32, %c0_i32_0 : i32, i32
  }
  func.func @transform_5(%arg0: i32) -> (i32, i32) {
    %c0_i32 = arith.constant 0 : i32
    %c0_i32_0 = arith.constant 0 : i32
    return %arg0, %c0_i32 : i32, i32
  }
}

</mosaic_0001>

<llo_original>
// kernel: tpu_custom_call.1
$region0: #{tpu_custom_call.1}
  #allocation0 [shape = 'u32[]', space=smem, size = 0x4, offset = 0x4, fixed_abs, tag = 'smem constant byte address 0x4 - core index']
  #allocation1 [shape = 'u32[144,128]{1,0:T(1,128)}', space=vmem, size = 0x12000, scoped, tag = 'internal scratch']
  %s0 = inlined_call_operand.vmem [shape: f32[8,32], index: 0, kind: input, shape index: {}]
  %s1 = inlined_call_operand.vmem [shape: f32[32,64], index: 1, kind: input, shape index: {}]
  %s2 = inlined_call_operand.vmem [shape: f32[1,64], index: 2, kind: input, shape index: {}]
  %s3 = inlined_call_operand.vmem [shape: f32[64,16], index: 3, kind: input, shape index: {}]
  %s4 = inlined_call_operand.vmem [shape: f32[1,16], index: 4, kind: input, shape index: {}]
  %s5 = inlined_call_operand.hbm [shape: f32[8,16], index: 5, kind: output, shape index: {}]
  %s6 = sld [smem:[#allocation0]]
  $region30: #{tpu_custom_call.1} parent=0
    _
  %s8 = ssub.s32 1, %s6
  %s9 = scalar_select 0, %s8, %s6
  $region1: #{tpu_custom_call.1} parent=0
    #allocation2 [shape = 'u8[4096]{0}', space=vmem, size = 0x1000, scoped, tag = 'output window, operand 0, single buffered']
    #allocation3 [shape = 's32[1]{0}', space=sflag, size = 0x4, scoped, tag = 'scoped memory for tpu_custom_call.1']
    %10 = vsyncpa [#allocation3], 0
    // Predicated region
    $region2: #{tpu_custom_call.1} parent=1 // pred_check
      _
    $region3: #{tpu_custom_call.1} parent=1 // pred_check_branch
      %12 = sbr.rel (0) target = $region5
    $region4: #{tpu_custom_call.1} parent=1 // pred_region
      _
    $region5: #{tpu_custom_call.1} parent=1 // pred_fallthru
      _
    // Predicated region
    $region6: #{tpu_custom_call.1} parent=1 // pred_check
      _
    $region7: #{tpu_custom_call.1} parent=1 // pred_check_branch
      %14 = sbr.rel (0) target = $region9
    $region8: #{tpu_custom_call.1} parent=1 // pred_region
      _
    $region9: #{tpu_custom_call.1} parent=1 // pred_fallthru
      _
    // Predicated region
    $region10: #{tpu_custom_call.1} parent=1 // pred_check
      _
    $region11: #{tpu_custom_call.1} parent=1 // pred_check_branch
      %16 = sbr.rel (0) target = $region13
    $region12: #{tpu_custom_call.1} parent=1 // pred_region
      _
    $region13: #{tpu_custom_call.1} parent=1 // pred_fallthru
      _
    // Predicated region
    $region14: #{tpu_custom_call.1} parent=1 // pred_check
      _
    $region15: #{tpu_custom_call.1} parent=1 // pred_check_branch
      %18 = sbr.rel (0) target = $region17
    $region16: #{tpu_custom_call.1} parent=1 // pred_region
      _
    $region17: #{tpu_custom_call.1} parent=1 // pred_fallthru
      _
    // Predicated region
    $region18: #{tpu_custom_call.1} parent=1 // pred_check
      _
    $region19: #{tpu_custom_call.1} parent=1 // pred_check_branch
      %20 = sbr.rel (0) target = $region21
    $region20: #{tpu_custom_call.1} parent=1 // pred_region
      _
    $region21: #{tpu_custom_call.1} parent=1 // pred_fallthru
      _
    %v21 = vld [vmem:[%s1] sm:$0xff]
    %v22 = vld [vmem:[%s1 + $0x8] sm:$0xff]
    %v23 = vld [vmem:[%s1 + $0x10] sm:$0xff]
    %v24 = vld [vmem:[%s1 + $0x18] sm:$0xff]
    %v25 = vld [vmem:[%s3] sm:$0xff]
    %v26 = vld [vmem:[%s3 + $0x8] sm:$0xff]
    %v27 = vld [vmem:[%s3 + $0x10] sm:$0xff]
    %v28 = vld [vmem:[%s3 + $0x18] sm:$0xff]
    %v29 = vld [vmem:[%s3 + $0x20] sm:$0xff]
    %v30 = vld [vmem:[%s3 + $0x28] sm:$0xff]
    %v31 = vld [vmem:[%s3 + $0x30] sm:$0xff]
    %v32 = vld [vmem:[%s3 + $0x38] sm:$0xff]
    %v33 = vld [vmem:[%s0] sm:$0xff]
    %v34 = vld [vmem:[%s2] sm:$0x1]
    %v36 = vlaneseq
    %v37 = vshrl.u32 %v36, 7
    %v38 = vsub.s32 0, %v37
    %v39 = vrot.slane %v34, %v38
    %vm41 = vcmask 261120
    %v43 = vsel %vm41, %v33, 0
    %45 = vmatprep.subr.mxu0 0.0
    %46 = vmatpush1.msra.mxu0 %v21
    %47 = vmatprep.subr.mxu0 0.0
    %48 = vmatpush1.msra.mxu0 %v22
    %49 = vmatprep.subr.mxu0 0.0
    %50 = vmatpush1.msra.mxu0 %v23
    %51 = vmatprep.subr.mxu0 0.0
    %52 = vmatpush1.msra.mxu0 %v24
    %53 = vmatprep.subr.mxu0 0.0
    %54 = vmatpush1.msra.mxu0 0.0
    %55 = vmatprep.subr.mxu0 0.0
    %56 = vmatpush1.msra.mxu0 0.0
    %57 = vmatprep.subr.mxu0 0.0
    %58 = vmatpush1.msra.mxu0 0.0
    %59 = vmatprep.subr.mxu0 0.0
    %60 = vmatpush1.msra.mxu0 0.0
    %61 = vmatprep.subr.mxu0 0.0
    %62 = vmatpush1.msra.mxu0 0.0
    %63 = vmatprep.subr.mxu0 0.0
    %64 = vmatpush1.msra.mxu0 0.0
    %65 = vmatprep.subr.mxu0 0.0
    %66 = vmatpush1.msra.mxu0 0.0
    %67 = vmatprep.subr.mxu0 0.0
    %68 = vmatpush1.msra.mxu0 0.0
    %69 = vmatprep.subr.mxu0 0.0
    %70 = vmatpush1.msra.mxu0 0.0
    %71 = vmatprep.subr.mxu0 0.0
    %72 = vmatpush1.msra.mxu0 0.0
    %73 = vmatprep.subr.mxu0 0.0
    %74 = vmatpush1.msra.mxu0 0.0
    %75 = vmatprep.subr.mxu0 0.0
    %76 = vmatpush1.msra.mxu0 0.0
    %77 = vmatprep.subr.mxu0 0.0
    %78 = vmatpush1.msra.mxu0 0.0
    %79 = vmatprep.subr.mxu0 0.0
    %80 = vmatpush1.msra.mxu0 0.0
    %81 = vmatprep.subr.mxu0 0.0
    %82 = vmatpush1.msra.mxu0 0.0
    %83 = vmatprep.subr.mxu0 0.0
    %84 = vmatpush1.msra.mxu0 0.0
    %85 = vmatprep.subr.mxu0 0.0
    %86 = vmatpush1.msra.mxu0 0.0
    %87 = vmatprep.subr.mxu0 0.0
    %88 = vmatpush1.msra.mxu0 0.0
    %89 = vmatprep.subr.mxu0 0.0
    %90 = vmatpush1.msra.mxu0 0.0
    %91 = vmatprep.subr.mxu0 0.0
    %92 = vmatpush1.msra.mxu0 0.0
    %93 = vmatprep.subr.mxu0 0.0
    %94 = vmatpush1.msra.mxu0 0.0
    %95 = vmatprep.subr.mxu0 0.0
    %96 = vmatpush1.msra.mxu0 0.0
    %97 = vmatprep.subr.mxu0 0.0
    %98 = vmatpush1.msra.mxu0 0.0
    %99 = vmatprep.subr.mxu0 0.0
    %100 = vmatpush1.msra.mxu0 0.0
    %101 = vmatprep.subr.mxu0 0.0
    %102 = vmatpush1.msra.mxu0 0.0
    %103 = vmatprep.subr.mxu0 0.0
    %104 = vmatpush1.msra.mxu0 0.0
    %105 = vmatprep.subr.mxu0 0.0
    %106 = vmatpush1.msra.mxu0 0.0
    %107 = vmatprep.subr.mxu0 0.0
    %108 = vmatpush1.msra.mxu0 0.0
    %109 = vmatprep.mubr.f32.mxu0 0.0
    %110 = vmatmul.mubr.f32.gmra.mrb[0].mxu0 %v43
    %v111 = vpop.f32.mrb[0].mxu0
    %v112 = vadd.f32 %v39, %v111
    %v113 = vpop.f32.mrb[0].mxu0
    %114 = vdwg.mxu0
    %v115 = vmax.f32 %v112, 0.0
    %v116 = vld [vmem:[%s4] sm:$0x1]
    %v118 = vlaneseq
    %v119 = vshrl.u32 %v118, 7
    %v120 = vsub.s32 0, %v119
    %v121 = vrot.slane %v116, %v120
    %vm123 = vcmask 523264
    %v125 = vsel %vm123, %v115, 0
    %127 = vmatprep.subr.mxu0 0.0
    %128 = vmatpush1.msra.mxu0 %v25
    %129 = vmatprep.subr.mxu0 0.0
    %130 = vmatpush1.msra.mxu0 %v26
    %131 = vmatprep.subr.mxu0 0.0
    %132 = vmatpush1.msra.mxu0 %v27
    %133 = vmatprep.subr.mxu0 0.0
    %134 = vmatpush1.msra.mxu0 %v28
    %135 = vmatprep.subr.mxu0 0.0
    %136 = vmatpush1.msra.mxu0 %v29
    %137 = vmatprep.subr.mxu0 0.0
    %138 = vmatpush1.msra.mxu0 %v30
    %139 = vmatprep.subr.mxu0 0.0
    %140 = vmatpush1.msra.mxu0 %v31
    %141 = vmatprep.subr.mxu0 0.0
    %142 = vmatpush1.msra.mxu0 %v32
    %143 = vmatprep.subr.mxu0 0.0
    %144 = vmatpush1.msra.mxu0 0.0
    %145 = vmatprep.subr.mxu0 0.0
    %146 = vmatpush1.msra.mxu0 0.0
    %147 = vmatprep.subr.mxu0 0.0
    %148 = vmatpush1.msra.mxu0 0.0
    %149 = vmatprep.subr.mxu0 0.0
    %150 = vmatpush1.msra.mxu0 0.0
    %151 = vmatprep.subr.mxu0 0.0
    %152 = vmatpush1.msra.mxu0 0.0
    %153 = vmatprep.subr.mxu0 0.0
    %154 = vmatpush1.msra.mxu0 0.0
    %155 = vmatprep.subr.mxu0 0.0
    %156 = vmatpush1.msra.mxu0 0.0
    %157 = vmatprep.subr.mxu0 0.0
    %158 = vmatpush1.msra.mxu0 0.0
    %159 = vmatprep.subr.mxu0 0.0
    %160 = vmatpush1.msra.mxu0 0.0
    %161 = vmatprep.subr.mxu0 0.0
    %162 = vmatpush1.msra.mxu0 0.0
    %163 = vmatprep.subr.mxu0 0.0
    %164 = vmatpush1.msra.mxu0 0.0
    %165 = vmatprep.subr.mxu0 0.0
    %166 = vmatpush1.msra.mxu0 0.0
    %167 = vmatprep.subr.mxu0 0.0
    %168 = vmatpush1.msra.mxu0 0.0
    %169 = vmatprep.subr.mxu0 0.0
    %170 = vmatpush1.msra.mxu0 0.0
    %171 = vmatprep.subr.mxu0 0.0
    %172 = vmatpush1.msra.mxu0 0.0
    %173 = vmatprep.subr.mxu0 0.0
    %174 = vmatpush1.msra.mxu0 0.0
    %175 = vmatprep.subr.mxu0 0.0
    %176 = vmatpush1.msra.mxu0 0.0
    %177 = vmatprep.subr.mxu0 0.0
    %178 = vmatpush1.msra.mxu0 0.0
    %179 = vmatprep.subr.mxu0 0.0
    %180 = vmatpush1.msra.mxu0 0.0
    %181 = vmatprep.subr.mxu0 0.0
    %182 = vmatpush1.msra.mxu0 0.0
    %183 = vmatprep.subr.mxu0 0.0
    %184 = vmatpush1.msra.mxu0 0.0
    %185 = vmatprep.subr.mxu0 0.0
    %186 = vmatpush1.msra.mxu0 0.0
    %187 = vmatprep.subr.mxu0 0.0
    %188 = vmatpush1.msra.mxu0 0.0
    %189 = vmatprep.subr.mxu0 0.0
    %190 = vmatpush1.msra.mxu0 0.0
    %191 = vmatprep.mubr.f32.mxu0 0.0
    %192 = vmatmul.mubr.f32.gmra.mrb[0].mxu0 %v125
    %v193 = vpop.f32.mrb[0].mxu0
    %v194 = vadd.f32 %v121, %v193
    %v195 = vpop.f32.mrb[0].mxu0
    %196 = vdwg.mxu0
    %vm197 = vcmask 130048
    %198 = vst.msk [vmem:[#allocation2] sm:$0xff] %vm197, %v194
    // Predicated region
    $region22: #{tpu_custom_call.1} parent=1 // pred_check
      _
    $region23: #{tpu_custom_call.1} parent=1 // pred_check_branch
      %200 = sbr.rel (0) target = $region25
    $region24: #{tpu_custom_call.1} parent=1 // pred_region
      %s202 = ssub.s32 128, 128
      %203 = vsyncadd [#allocation3], %s202
      %s205 = sshll.u32 [#allocation2], 4
      %s206 = int_to_ptr.vmem [resolvable:$true] %s205
      %208 = dma.vmem_to_hbm [thread:$0]  %s206, 128, %s5, [#allocation3]
    $region25: #{tpu_custom_call.1} parent=1 // pred_fallthru
      _
    // Predicated region
    $region26: #{tpu_custom_call.1} parent=1 // pred_check
      _
    $region27: #{tpu_custom_call.1} parent=1 // pred_check_branch
      %210 = sbr.rel (0) target = $region29
    $region28: #{tpu_custom_call.1} parent=1 // pred_region
      %211 = dma.done [#allocation3], 128
    $region29: #{tpu_custom_call.1} parent=1 // pred_fallthru
      _
    %212 = vsyncpa [#allocation3], 1

</llo_original>
